<compile_context>
chip_gen: v7x
topology: tpu7x:2x2x1
jax: 0.10.0
libtpu: 0.0.40
codegen_flags: <defaults>
</compile_context>

<pallas_src>
import functools
import math

import jax
import jax.numpy as jnp
from jax.experimental import pallas as pl
from jax.experimental.pallas import tpu as pltpu

_LOG10_SCALE = 10.0 / math.log(10.0)


def _round_up(x, m):
    return ((x + m - 1) // m) * m


def _pick_tiles(n_rows, dim, itemsize, budget_bytes=8 * 1024 * 1024):
    """Row tile TN (multiple of 8, <=256) and time tile TD (multiple of 128) sized
    so the double-buffered input working set (2 inputs x 2 pipeline buffers) fits
    the budget -- safe for v5e's 16 MiB scoped default and v7x's 64 MiB VMEM."""
    dim_p = _round_up(dim, 128)
    tn = 8
    while tn < 256 and tn < n_rows:
        tn *= 2
    td = dim_p
    while 4 * tn * td * itemsize > budget_bytes:
        if td > 128:
            td = _round_up((td + 1) // 2, 128)
        elif tn > 8:
            tn //= 2
        else:
            break
    return tn, td


# --------------------------------------------------------------------------- #
# Pallas kernel: per-row zero-mean SI-SDR (torchmetrics semantics, zero_mean=True)
# via 5 running raw sums, folded algebraically at finalize.
# --------------------------------------------------------------------------- #
def _sisdr_kernel(pred_ref, tgt_ref, out_ref,
                  sp_ref, st_ref, spt_ref, spp_ref, stt_ref,
                  *, inv_d, eps):
    k = pl.program_id(1)

    @pl.when(k == 0)
    def _init():
        sp_ref[...] = jnp.zeros_like(sp_ref)
        st_ref[...] = jnp.zeros_like(st_ref)
        spt_ref[...] = jnp.zeros_like(spt_ref)
        spp_ref[...] = jnp.zeros_like(spp_ref)
        stt_ref[...] = jnp.zeros_like(stt_ref)

    p = pred_ref[...].astype(jnp.float32)          # (TN, TD)
    t = tgt_ref[...].astype(jnp.float32)           # (TN, TD)

    sp_ref[...] += jnp.sum(p, axis=-1, keepdims=True)
    st_ref[...] += jnp.sum(t, axis=-1, keepdims=True)
    spt_ref[...] += jnp.sum(p * t, axis=-1, keepdims=True)
    spp_ref[...] += jnp.sum(p * p, axis=-1, keepdims=True)
    stt_ref[...] += jnp.sum(t * t, axis=-1, keepdims=True)

    @pl.when(k == pl.num_programs(1) - 1)
    def _finalize():
        sp = sp_ref[...]
        st = st_ref[...]
        # zero_mean=True folded: sum((x - xbar)(y - ybar)) = sum(xy) - sum(x)sum(y)/D
        dot_pt = spt_ref[...] - sp * st * inv_d
        tgt_en = stt_ref[...] - st * st * inv_d
        pred_en = spp_ref[...] - sp * sp * inv_d
        # alpha = (<p,t> + eps) / (||t||^2 + eps); target_scaled/noise never materialized:
        alpha = (dot_pt + eps) / (tgt_en + eps)
        sig_en = alpha * alpha * tgt_en
        noi_en = jnp.maximum(pred_en - 2.0 * alpha * dot_pt + sig_en, 0.0)
        val = (sig_en + eps) / (noi_en + eps)
        out_ref[...] = _LOG10_SCALE * jnp.log(val)   # (TN, 1)


def si_sdr_pallas(predict_audio, clean_audio):
    """(B, C, D) inputs -> per-(B*C) zero-mean SI-SDR values, shape (B*C,)."""
    B, C, D = predict_audio.shape
    N = B * C
    pred2d = predict_audio.reshape(N, D)
    tgt2d = clean_audio.reshape(N, D)

    itemsize = int(jnp.dtype(pred2d.dtype).itemsize)
    TN, TD = _pick_tiles(N, D, itemsize)
    Np = _round_up(N, TN)
    Dp = _round_up(D, TD)
    if (Np, Dp) != (N, D):
        # Zero padding is exact under the raw-sum formulation: padded elements
        # contribute nothing to the 5 sums, and 1/D uses the true D. Padded rows
        # produce a harmless finite value and are sliced off below.
        pred2d = jnp.pad(pred2d, ((0, Np - N), (0, Dp - D)))
        tgt2d = jnp.pad(tgt2d, ((0, Np - N), (0, Dp - D)))

    eps = float(jnp.finfo(predict_audio.dtype).eps)  # torchmetrics: finfo(preds.dtype).eps
    kernel = functools.partial(_sisdr_kernel, inv_d=1.0 / D, eps=eps)

    grid = (Np // TN, Dp // TD)
    vmem_limit = int(min(max(4 * TN * TD * itemsize + 8 * TN * TD * 4 + (4 << 20),
                             16 << 20),
                         48 << 20))

    out = pl.pallas_call(
        kernel,
        out_shape=jax.ShapeDtypeStruct((Np, 1), jnp.float32),
        grid_spec=pltpu.PrefetchScalarGridSpec(
            num_scalar_prefetch=0,
            grid=grid,
            in_specs=[
                pl.BlockSpec((TN, TD), lambda i, k: (i, k)),
                pl.BlockSpec((TN, TD), lambda i, k: (i, k)),
            ],
            out_specs=pl.BlockSpec((TN, 1), lambda i, k: (i, 0)),
            scratch_shapes=[pltpu.VMEM((TN, 1), jnp.float32)] * 5,
        ),
        compiler_params=pltpu.CompilerParams(
            dimension_semantics=("parallel", "arbitrary"),
            vmem_limit_bytes=vmem_limit,
        ),
        cost_estimate=pl.CostEstimate(
            flops=10 * N * D,
            bytes_accessed=2 * N * D * itemsize + 4 * N,
            transcendentals=N,
        ),
    )(pred2d, tgt2d)
    return out[:N, 0]


# --------------------------------------------------------------------------- #
# Module wrapper mirroring models/loss.py::SISDRPesq.forward
# --------------------------------------------------------------------------- #
class SISDRPesq:
    def __init__(self, num_chunks, recover_weight=0.5):
        self.num_chunks = num_chunks
        self.recover_weight = recover_weight
        # TODO(synk): torch-pesq `PesqLoss` (STFT + bark-scale filterbank + loudness /
        # disturbance model) has no clean Pallas equivalent; only the
        # recover_weight == 0 branch of forward() is implemented here.

    def __call__(self, predict_audio, clean_audio):
        # predict_audio, clean_audio: (batch_size, num_sources, dim)
        sisdr_vals = si_sdr_pallas(predict_audio, clean_audio)   # (B*C,)
        loss_t = -jnp.mean(sisdr_vals)

        if self.recover_weight == 0:
            return {
                "main": loss_t,
                "si_sdr": loss_t,
                "pesq": jnp.array(0, dtype=jnp.float32),
            }
        raise NotImplementedError(
            "PesqLoss branch (recover_weight != 0) is not implemented; "
            "see TODO(synk) in __init__."
        )


# --------------------------------------------------------------------------- #
# Reference (pure JAX, centered/direct torchmetrics form) for a sanity check
# --------------------------------------------------------------------------- #
def _si_sdr_ref(pred, tgt):
    eps = jnp.finfo(jnp.float32).eps
    pred = pred - jnp.mean(pred, axis=-1, keepdims=True)
    tgt = tgt - jnp.mean(tgt, axis=-1, keepdims=True)
    alpha = (jnp.sum(pred * tgt, -1, keepdims=True) + eps) / (
        jnp.sum(tgt * tgt, -1, keepdims=True) + eps
    )
    ts = alpha * tgt
    noise = ts - pred
    val = (jnp.sum(ts * ts, -1) + eps) / (jnp.sum(noise * noise, -1) + eps)
    return 10.0 * jnp.log10(val)


if __name__ == "__main__":
    key = jax.random.PRNGKey(0)
    k1, k2 = jax.random.split(key)

    B, C, D = 2, 1, 2048  # (batch_size, num_sources=1, dim)
    clean = jax.random.normal(k1, (B, C, D), dtype=jnp.float32)
    noise = 0.3 * jax.random.normal(k2, (B, C, D), dtype=jnp.float32)
    predict = clean + noise

    loss_mod = SISDRPesq(num_chunks=1, recover_weight=0.0)
    out = loss_mod(predict, clean)
    jax.block_until_ready(out["main"])

    # sanity check against a pure-JAX reference
    ref_main = -jnp.mean(_si_sdr_ref(predict.reshape(B * C, D), clean.reshape(B * C, D)))
    assert jnp.allclose(out["main"], ref_main, rtol=1e-4, atol=1e-4), (out["main"], ref_main)
    assert jnp.allclose(out["si_sdr"], out["main"])
    assert out["pesq"] == 0

    print("KERNEL_OK")
</pallas_src>

<mosaic_0001>
module attributes {stable_mosaic.version = 11 : i64} {
  func.func @_sisdr_kernel(%arg0: i32, %arg1: i32, %arg2: memref<8x2048xf32, #tpu.memory_space<vmem>>, %arg3: memref<8x2048xf32, #tpu.memory_space<vmem>>, %arg4: memref<8x1xf32, #tpu.memory_space<vmem>>, %arg5: memref<8x1xf32, #tpu.memory_space<vmem>>, %arg6: memref<8x1xf32, #tpu.memory_space<vmem>>, %arg7: memref<8x1xf32, #tpu.memory_space<vmem>>, %arg8: memref<8x1xf32, #tpu.memory_space<vmem>>, %arg9: memref<8x1xf32, #tpu.memory_space<vmem>>) attributes {dimension_semantics = [#tpu.dimension_semantics<parallel>, #tpu.dimension_semantics<arbitrary>], iteration_bounds = array<i64: 1, 1>, scalar_prefetch = 0 : i64, scratch_operands = 5 : i64, tpu.core_type = #tpu.core_type<tc>, window_params = [{transform_indices = @transform_0, window_bounds = array<i64: 8, 2048>}, {transform_indices = @transform_1, window_bounds = array<i64: 8, 2048>}, {transform_indices = @transform_2, window_bounds = array<i64: 8, 1>}]} {
    %c0_i32 = arith.constant 0 : i32
    %0 = arith.cmpi eq, %arg1, %c0_i32 : i32
    %1 = arith.extui %0 : i1 to i32
    %c0_i32_0 = arith.constant 0 : i32
    %2 = arith.cmpi ne, %1, %c0_i32_0 : i32
    scf.if %2 {
      %cst_30 = arith.constant 0.000000e+00 : f32
      %36 = vector.broadcast %cst_30 : f32 to vector<8x1xf32>
      %c0_31 = arith.constant 0 : index
      %c0_32 = arith.constant 0 : index
      %37 = vector.load %arg5[%c0_31, %c0_32] : memref<8x1xf32, #tpu.memory_space<vmem>>, vector<8x1xf32>
      tpu.vector_store %arg5[%c0_31, %c0_32], %36 {strides = array<i32>} : memref<8x1xf32, #tpu.memory_space<vmem>>, vector<8x1xf32>,
      %cst_33 = arith.constant 0.000000e+00 : f32
      %38 = vector.broadcast %cst_33 : f32 to vector<8x1xf32>
      %c0_34 = arith.constant 0 : index
      %c0_35 = arith.constant 0 : index
      %39 = vector.load %arg6[%c0_34, %c0_35] : memref<8x1xf32, #tpu.memory_space<vmem>>, vector<8x1xf32>
      tpu.vector_store %arg6[%c0_34, %c0_35], %38 {strides = array<i32>} : memref<8x1xf32, #tpu.memory_space<vmem>>, vector<8x1xf32>,
      %cst_36 = arith.constant 0.000000e+00 : f32
      %40 = vector.broadcast %cst_36 : f32 to vector<8x1xf32>
      %c0_37 = arith.constant 0 : index
      %c0_38 = arith.constant 0 : index
      %41 = vector.load %arg7[%c0_37, %c0_38] : memref<8x1xf32, #tpu.memory_space<vmem>>, vector<8x1xf32>
      tpu.vector_store %arg7[%c0_37, %c0_38], %40 {strides = array<i32>} : memref<8x1xf32, #tpu.memory_space<vmem>>, vector<8x1xf32>,
      %cst_39 = arith.constant 0.000000e+00 : f32
      %42 = vector.broadcast %cst_39 : f32 to vector<8x1xf32>
      %c0_40 = arith.constant 0 : index
      %c0_41 = arith.constant 0 : index
      %43 = vector.load %arg8[%c0_40, %c0_41] : memref<8x1xf32, #tpu.memory_space<vmem>>, vector<8x1xf32>
      tpu.vector_store %arg8[%c0_40, %c0_41], %42 {strides = array<i32>} : memref<8x1xf32, #tpu.memory_space<vmem>>, vector<8x1xf32>,
      %cst_42 = arith.constant 0.000000e+00 : f32
      %44 = vector.broadcast %cst_42 : f32 to vector<8x1xf32>
      %c0_43 = arith.constant 0 : index
      %c0_44 = arith.constant 0 : index
      %45 = vector.load %arg9[%c0_43, %c0_44] : memref<8x1xf32, #tpu.memory_space<vmem>>, vector<8x1xf32>
      tpu.vector_store %arg9[%c0_43, %c0_44], %44 {strides = array<i32>} : memref<8x1xf32, #tpu.memory_space<vmem>>, vector<8x1xf32>,
    } else {
    }
    %c0 = arith.constant 0 : index
    %c0_1 = arith.constant 0 : index
    %3 = vector.load %arg2[%c0, %c0_1] : memref<8x2048xf32, #tpu.memory_space<vmem>>, vector<8x2048xf32>
    %c0_2 = arith.constant 0 : index
    %c0_3 = arith.constant 0 : index
    %4 = vector.load %arg3[%c0_2, %c0_3] : memref<8x2048xf32, #tpu.memory_space<vmem>>, vector<8x2048xf32>
    %c0_4 = arith.constant 0 : index
    %c0_5 = arith.constant 0 : index
    %5 = vector.load %arg5[%c0_4, %c0_5] : memref<8x1xf32, #tpu.memory_space<vmem>>, vector<8x1xf32>
    %cst = arith.constant dense<0.000000e+00> : vector<8xf32>
    %6 = vector.multi_reduction <add>, %3, %cst [1] : vector<8x2048xf32> to vector<8xf32>
    %7 = vector.shape_cast %6 : vector<8xf32> to vector<8x1xf32>
    %8 = arith.addf %5, %7 : vector<8x1xf32>
    %c0_6 = arith.constant 0 : index
    %c0_7 = arith.constant 0 : index
    %9 = vector.load %arg5[%c0_6, %c0_7] : memref<8x1xf32, #tpu.memory_space<vmem>>, vector<8x1xf32>
    tpu.vector_store %arg5[%c0_6, %c0_7], %8 {strides = array<i32>} : memref<8x1xf32, #tpu.memory_space<vmem>>, vector<8x1xf32>,
    %c0_8 = arith.constant 0 : index
    %c0_9 = arith.constant 0 : index
    %10 = vector.load %arg6[%c0_8, %c0_9] : memref<8x1xf32, #tpu.memory_space<vmem>>, vector<8x1xf32>
    %cst_10 = arith.constant dense<0.000000e+00> : vector<8xf32>
    %11 = vector.multi_reduction <add>, %4, %cst_10 [1] : vector<8x2048xf32> to vector<8xf32>
    %12 = vector.shape_cast %11 : vector<8xf32> to vector<8x1xf32>
    %13 = arith.addf %10, %12 : vector<8x1xf32>
    %c0_11 = arith.constant 0 : index
    %c0_12 = arith.constant 0 : index
    %14 = vector.load %arg6[%c0_11, %c0_12] : memref<8x1xf32, #tpu.memory_space<vmem>>, vector<8x1xf32>
    tpu.vector_store %arg6[%c0_11, %c0_12], %13 {strides = array<i32>} : memref<8x1xf32, #tpu.memory_space<vmem>>, vector<8x1xf32>,
    %c0_13 = arith.constant 0 : index
    %c0_14 = arith.constant 0 : index
    %15 = vector.load %arg7[%c0_13, %c0_14] : memref<8x1xf32, #tpu.memory_space<vmem>>, vector<8x1xf32>
    %16 = arith.mulf %3, %4 : vector<8x2048xf32>
    %cst_15 = arith.constant dense<0.000000e+00> : vector<8xf32>
    %17 = vector.multi_reduction <add>, %16, %cst_15 [1] : vector<8x2048xf32> to vector<8xf32>
    %18 = vector.shape_cast %17 : vector<8xf32> to vector<8x1xf32>
    %19 = arith.addf %15, %18 : vector<8x1xf32>
    %c0_16 = arith.constant 0 : index
    %c0_17 = arith.constant 0 : index
    %20 = vector.load %arg7[%c0_16, %c0_17] : memref<8x1xf32, #tpu.memory_space<vmem>>, vector<8x1xf32>
    tpu.vector_store %arg7[%c0_16, %c0_17], %19 {strides = array<i32>} : memref<8x1xf32, #tpu.memory_space<vmem>>, vector<8x1xf32>,
    %c0_18 = arith.constant 0 : index
    %c0_19 = arith.constant 0 : index
    %21 = vector.load %arg8[%c0_18, %c0_19] : memref<8x1xf32, #tpu.memory_space<vmem>>, vector<8x1xf32>
    %22 = arith.mulf %3, %3 : vector<8x2048xf32>
    %cst_20 = arith.constant dense<0.000000e+00> : vector<8xf32>
    %23 = vector.multi_reduction <add>, %22, %cst_20 [1] : vector<8x2048xf32> to vector<8xf32>
    %24 = vector.shape_cast %23 : vector<8xf32> to vector<8x1xf32>
    %25 = arith.addf %21, %24 : vector<8x1xf32>
    %c0_21 = arith.constant 0 : index
    %c0_22 = arith.constant 0 : index
    %26 = vector.load %arg8[%c0_21, %c0_22] : memref<8x1xf32, #tpu.memory_space<vmem>>, vector<8x1xf32>
    tpu.vector_store %arg8[%c0_21, %c0_22], %25 {strides = array<i32>} : memref<8x1xf32, #tpu.memory_space<vmem>>, vector<8x1xf32>,
    %c0_23 = arith.constant 0 : index
    %c0_24 = arith.constant 0 : index
    %27 = vector.load %arg9[%c0_23, %c0_24] : memref<8x1xf32, #tpu.memory_space<vmem>>, vector<8x1xf32>
    %28 = arith.mulf %4, %4 : vector<8x2048xf32>
    %cst_25 = arith.constant dense<0.000000e+00> : vector<8xf32>
    %29 = vector.multi_reduction <add>, %28, %cst_25 [1] : vector<8x2048xf32> to vector<8xf32>
    %30 = vector.shape_cast %29 : vector<8xf32> to vector<8x1xf32>
    %31 = arith.addf %27, %30 : vector<8x1xf32>
    %c0_26 = arith.constant 0 : index
    %c0_27 = arith.constant 0 : index
    %32 = vector.load %arg9[%c0_26, %c0_27] : memref<8x1xf32, #tpu.memory_space<vmem>>, vector<8x1xf32>
    tpu.vector_store %arg9[%c0_26, %c0_27], %31 {strides = array<i32>} : memref<8x1xf32, #tpu.memory_space<vmem>>, vector<8x1xf32>,
    %c0_i32_28 = arith.constant 0 : i32
    %33 = arith.cmpi eq, %arg1, %c0_i32_28 : i32
    %34 = arith.extui %33 : i1 to i32
    %c0_i32_29 = arith.constant 0 : i32
    %35 = arith.cmpi ne, %34, %c0_i32_29 : i32
    scf.if %35 {
      %c0_30 = arith.constant 0 : index
      %c0_31 = arith.constant 0 : index
      %36 = vector.load %arg5[%c0_30, %c0_31] : memref<8x1xf32, #tpu.memory_space<vmem>>, vector<8x1xf32>
      %c0_32 = arith.constant 0 : index
      %c0_33 = arith.constant 0 : index
      %37 = vector.load %arg6[%c0_32, %c0_33] : memref<8x1xf32, #tpu.memory_space<vmem>>, vector<8x1xf32>
      %c0_34 = arith.constant 0 : index
      %c0_35 = arith.constant 0 : index
      %38 = vector.load %arg7[%c0_34, %c0_35] : memref<8x1xf32, #tpu.memory_space<vmem>>, vector<8x1xf32>
      %39 = arith.mulf %36, %37 : vector<8x1xf32>
      %cst_36 = arith.constant 4.8828125E-4 : f32
      %40 = vector.broadcast %cst_36 : f32 to vector<8x1xf32>
      %41 = arith.mulf %39, %40 : vector<8x1xf32>
      %42 = arith.subf %38, %41 : vector<8x1xf32>
      %c0_37 = arith.constant 0 : index
      %c0_38 = arith.constant 0 : index
      %43 = vector.load %arg9[%c0_37, %c0_38] : memref<8x1xf32, #tpu.memory_space<vmem>>, vector<8x1xf32>
      %44 = arith.mulf %37, %37 : vector<8x1xf32>
      %cst_39 = arith.constant 4.8828125E-4 : f32
      %45 = vector.broadcast %cst_39 : f32 to vector<8x1xf32>
      %46 = arith.mulf %44, %45 : vector<8x1xf32>
      %47 = arith.subf %43, %46 : vector<8x1xf32>
      %c0_40 = arith.constant 0 : index
      %c0_41 = arith.constant 0 : index
      %48 = vector.load %arg8[%c0_40, %c0_41] : memref<8x1xf32, #tpu.memory_space<vmem>>, vector<8x1xf32>
      %49 = arith.mulf %36, %36 : vector<8x1xf32>
      %cst_42 = arith.constant 4.8828125E-4 : f32
      %50 = vector.broadcast %cst_42 : f32 to vector<8x1xf32>
      %51 = arith.mulf %49, %50 : vector<8x1xf32>
      %52 = arith.subf %48, %51 : vector<8x1xf32>
      %cst_43 = arith.constant 1.1920929E-7 : f32
      %53 = vector.broadcast %cst_43 : f32 to vector<8x1xf32>
      %54 = arith.addf %42, %53 : vector<8x1xf32>
      %cst_44 = arith.constant 1.1920929E-7 : f32
      %55 = vector.broadcast %cst_44 : f32 to vector<8x1xf32>
      %56 = arith.addf %47, %55 : vector<8x1xf32>
      %57 = arith.divf %54, %56 : vector<8x1xf32>
      %58 = arith.mulf %57, %57 : vector<8x1xf32>
      %59 = arith.mulf %58, %47 : vector<8x1xf32>
      %cst_45 = arith.constant 2.000000e+00 : f32
      %60 = vector.broadcast %cst_45 : f32 to vector<8x1xf32>
      %61 = arith.mulf %60, %57 : vector<8x1xf32>
      %62 = arith.mulf %61, %42 : vector<8x1xf32>
      %63 = arith.subf %52, %62 : vector<8x1xf32>
      %64 = arith.addf %63, %59 : vector<8x1xf32>
      %cst_46 = arith.constant 0.000000e+00 : f32
      %65 = vector.broadcast %cst_46 : f32 to vector<8x1xf32>
      %66 = arith.maximumf %64, %65 : vector<8x1xf32>
      %cst_47 = arith.constant 1.1920929E-7 : f32
      %67 = vector.broadcast %cst_47 : f32 to vector<8x1xf32>
      %68 = arith.addf %59, %67 : vector<8x1xf32>
      %cst_48 = arith.constant 1.1920929E-7 : f32
      %69 = vector.broadcast %cst_48 : f32 to vector<8x1xf32>
      %70 = arith.addf %66, %69 : vector<8x1xf32>
      %71 = arith.divf %68, %70 : vector<8x1xf32>
      %72 = math.log %71 : vector<8x1xf32>
      %cst_49 = arith.constant 4.34294462 : f32
      %73 = vector.broadcast %cst_49 : f32 to vector<8x1xf32>
      %74 = arith.mulf %73, %72 : vector<8x1xf32>
      %c0_50 = arith.constant 0 : index
      %c0_51 = arith.constant 0 : index
      %75 = vector.load %arg4[%c0_50, %c0_51] : memref<8x1xf32, #tpu.memory_space<vmem>>, vector<8x1xf32>
      tpu.vector_store %arg4[%c0_50, %c0_51], %74 {strides = array<i32>} : memref<8x1xf32, #tpu.memory_space<vmem>>, vector<8x1xf32>,
    } else {
    }
    return
  }
  func.func @transform_0(%arg0: i32, %arg1: i32) -> (i32, i32) {
    %c0_i32 = arith.constant 0 : i32
    return %arg0, %arg1 : i32, i32
  }
  func.func @transform_1(%arg0: i32, %arg1: i32) -> (i32, i32) {
    %c0_i32 = arith.constant 0 : i32
    return %arg0, %arg1 : i32, i32
  }
  func.func @transform_2(%arg0: i32, %arg1: i32) -> (i32, i32) {
    %c0_i32 = arith.constant 0 : i32
    %c0_i32_0 = arith.constant 0 : i32
    return %arg0, %c0_i32 : i32, i32
  }
}

</mosaic_0001>

<llo_original>
// kernel: tpu_custom_call.1
$region0: #{tpu_custom_call.1}
  #allocation0 [shape = 'u32[]', space=smem, size = 0x4, offset = 0x4, fixed_abs, tag = 'smem constant byte address 0x4 - core index']
  #allocation1 [shape = 'u32[144,128]{1,0:T(1,128)}', space=vmem, size = 0x12000, scoped, tag = 'internal scratch']
  #allocation2 [shape = 'f32[8,1]{1,0:T(8,128)}', space=vmem, size = 0x1000, scoped, tag = 'scratch operand']
  #allocation3 [shape = 'f32[8,1]{1,0:T(8,128)}', space=vmem, size = 0x1000, scoped, tag = 'scratch operand']
  #allocation4 [shape = 'f32[8,1]{1,0:T(8,128)}', space=vmem, size = 0x1000, scoped, tag = 'scratch operand']
  #allocation5 [shape = 'f32[8,1]{1,0:T(8,128)}', space=vmem, size = 0x1000, scoped, tag = 'scratch operand']
  #allocation6 [shape = 'f32[8,1]{1,0:T(8,128)}', space=vmem, size = 0x1000, scoped, tag = 'scratch operand']
  %s0 = inlined_call_operand.hbm [shape: f32[8,2048], index: 0, kind: input, shape index: {}]
  %s1 = inlined_call_operand.hbm [shape: f32[8,2048], index: 1, kind: input, shape index: {}]
  %s2 = inlined_call_operand.vmem [shape: f32[8,1], index: 2, kind: output, shape index: {}]
  %s3 = sld [smem:[#allocation0]]
  $region34: #{tpu_custom_call.1} parent=0
    _
  %s5 = ssub.s32 1, %s3
  %s6 = scalar_select 0, %s5, %s3
  $region1: #{tpu_custom_call.1} parent=0
    #allocation7 [shape = 'u8[65536]{0}', space=vmem, size = 0x10000, scoped, tag = 'input window, operand 0, single buffered']
    #allocation8 [shape = 's32[1]{0}', space=sflag, size = 0x4, scoped, tag = 'scoped memory for tpu_custom_call.1']
    #allocation9 [shape = 'u8[65536]{0}', space=vmem, size = 0x10000, scoped, tag = 'input window, operand 1, single buffered']
    #allocation10 [shape = 's32[1]{0}', space=sflag, size = 0x4, scoped, tag = 'scoped memory for tpu_custom_call.1']
    %7 = vsyncpa [#allocation8], 0
    %8 = vsyncpa [#allocation10], 0
    // Predicated region
    $region2: #{tpu_custom_call.1} parent=1 // pred_check
      _
    $region3: #{tpu_custom_call.1} parent=1 // pred_check_branch
      %10 = sbr.rel (0) target = $region5
    $region4: #{tpu_custom_call.1} parent=1 // pred_region
      %s12 = ssub.s32 2048, 2048
      %13 = vsyncadd [#allocation8], %s12
      %s15 = sshll.u32 [#allocation7], 4
      %s16 = int_to_ptr.vmem [resolvable:$true] %s15
      %18 = dma.hbm_to_vmem [thread:$0]  %s0, 2048, %s16, [#allocation8]
    $region5: #{tpu_custom_call.1} parent=1 // pred_fallthru
      _
    // Predicated region
    $region6: #{tpu_custom_call.1} parent=1 // pred_check
      _
    $region7: #{tpu_custom_call.1} parent=1 // pred_check_branch
      %20 = sbr.rel (0) target = $region9
    $region8: #{tpu_custom_call.1} parent=1 // pred_region
      %s22 = ssub.s32 2048, 2048
      %23 = vsyncadd [#allocation10], %s22
      %s25 = sshll.u32 [#allocation9], 4
      %s26 = int_to_ptr.vmem [resolvable:$true] %s25
      %28 = dma.hbm_to_vmem [thread:$0]  %s1, 2048, %s26, [#allocation10]
    $region9: #{tpu_custom_call.1} parent=1 // pred_fallthru
      _
    // Predicated region
    $region10: #{tpu_custom_call.1} parent=1 // pred_check
      _
    $region11: #{tpu_custom_call.1} parent=1 // pred_check_branch
      %30 = sbr.rel (0) target = $region13
    $region12: #{tpu_custom_call.1} parent=1 // pred_region
      %31 = dma.done [#allocation8], 2048
    $region13: #{tpu_custom_call.1} parent=1 // pred_fallthru
      _
    // Predicated region
    $region14: #{tpu_custom_call.1} parent=1 // pred_check
      _
    $region15: #{tpu_custom_call.1} parent=1 // pred_check_branch
      %33 = sbr.rel (0) target = $region17
    $region16: #{tpu_custom_call.1} parent=1 // pred_region
      %34 = dma.done [#allocation10], 2048
    $region17: #{tpu_custom_call.1} parent=1 // pred_fallthru
      _
    %p35 = scmp.eq.s32.totalorder 0, 0
    // Predicated region
    $region18: #{tpu_custom_call.1} parent=1 // pred_check
      %p36 = pneg %p35
    $region19: #{tpu_custom_call.1} parent=1 // pred_check_branch
      %38 = sbr.rel (%p36) target = $region21
    $region20: #{tpu_custom_call.1} parent=1 // pred_region
      %vm39 = vcmask 7168
      %40 = vst.msk [vmem:[#allocation2] sm:$0xff] %vm39, 0.0
      %41 = vst.msk [vmem:[#allocation3] sm:$0xff] %vm39, 0.0
      %42 = vst.msk [vmem:[#allocation4] sm:$0xff] %vm39, 0.0
      %43 = vst.msk [vmem:[#allocation5] sm:$0xff] %vm39, 0.0
      %44 = vst.msk [vmem:[#allocation6] sm:$0xff] %vm39, 0.0
    $region21: #{tpu_custom_call.1} parent=1 // pred_fallthru
      _
    %v45 = vld [vmem:[#allocation7] sm:$0xff]
    %v46 = vld [vmem:[#allocation7 + $0x8] sm:$0xff]
    %v47 = vld [vmem:[#allocation7 + $0x10] sm:$0xff]
    %v48 = vld [vmem:[#allocation7 + $0x18] sm:$0xff]
    %v49 = vld [vmem:[#allocation7 + $0x20] sm:$0xff]
    %v50 = vld [vmem:[#allocation7 + $0x28] sm:$0xff]
    %v51 = vld [vmem:[#allocation7 + $0x30] sm:$0xff]
    %v52 = vld [vmem:[#allocation7 + $0x38] sm:$0xff]
    %v53 = vld [vmem:[#allocation7 + $0x40] sm:$0xff]
    %v54 = vld [vmem:[#allocation7 + $0x48] sm:$0xff]
    %v55 = vld [vmem:[#allocation7 + $0x50] sm:$0xff]
    %v56 = vld [vmem:[#allocation7 + $0x58] sm:$0xff]
    %v57 = vld [vmem:[#allocation7 + $0x60] sm:$0xff]
    %v58 = vld [vmem:[#allocation7 + $0x68] sm:$0xff]
    %v59 = vld [vmem:[#allocation7 + $0x70] sm:$0xff]
    %v60 = vld [vmem:[#allocation7 + $0x78] sm:$0xff]
    %v61 = vld [vmem:[#allocation9] sm:$0xff]
    %v62 = vld [vmem:[#allocation9 + $0x8] sm:$0xff]
    %v63 = vld [vmem:[#allocation9 + $0x10] sm:$0xff]
    %v64 = vld [vmem:[#allocation9 + $0x18] sm:$0xff]
    %v65 = vld [vmem:[#allocation9 + $0x20] sm:$0xff]
    %v66 = vld [vmem:[#allocation9 + $0x28] sm:$0xff]
    %v67 = vld [vmem:[#allocation9 + $0x30] sm:$0xff]
    %v68 = vld [vmem:[#allocation9 + $0x38] sm:$0xff]
    %v69 = vld [vmem:[#allocation9 + $0x40] sm:$0xff]
    %v70 = vld [vmem:[#allocation9 + $0x48] sm:$0xff]
    %v71 = vld [vmem:[#allocation9 + $0x50] sm:$0xff]
    %v72 = vld [vmem:[#allocation9 + $0x58] sm:$0xff]
    %v73 = vld [vmem:[#allocation9 + $0x60] sm:$0xff]
    %v74 = vld [vmem:[#allocation9 + $0x68] sm:$0xff]
    %v75 = vld [vmem:[#allocation9 + $0x70] sm:$0xff]
    %v76 = vld [vmem:[#allocation9 + $0x78] sm:$0xff]
    %v77 = vld [vmem:[#allocation2] sm:$0xff]
    %v78 = vadd.f32 %v45, %v46
    %v79 = vadd.f32 %v78, %v47
    %v80 = vadd.f32 %v79, %v48
    %v81 = vadd.f32 %v80, %v49
    %v82 = vadd.f32 %v81, %v50
    %v83 = vadd.f32 %v82, %v51
    %v84 = vadd.f32 %v83, %v52
    %v85 = vadd.f32 %v84, %v53
    %v86 = vadd.f32 %v85, %v54
    %v87 = vadd.f32 %v86, %v55
    %v88 = vadd.f32 %v87, %v56
    %v89 = vadd.f32 %v88, %v57
    %v90 = vadd.f32 %v89, %v58
    %v91 = vadd.f32 %v90, %v59
    %v92 = vadd.f32 %v91, %v60
    %93 = vadd.xlane.f32.xlu0 %v92
    %v94 = vpop.xlane.xlu0 %93
    %v95 = vadd.f32 %v77, %v94
    %vm96 = vcmask 7168
    %97 = vst.msk [vmem:[#allocation2] sm:$0xff] %vm96, %v95
    %v98 = vld [vmem:[#allocation3] sm:$0xff]
    %v99 = vadd.f32 %v61, %v62
    %v100 = vadd.f32 %v99, %v63
    %v101 = vadd.f32 %v100, %v64
    %v102 = vadd.f32 %v101, %v65
    %v103 = vadd.f32 %v102, %v66
    %v104 = vadd.f32 %v103, %v67
    %v105 = vadd.f32 %v104, %v68
    %v106 = vadd.f32 %v105, %v69
    %v107 = vadd.f32 %v106, %v70
    %v108 = vadd.f32 %v107, %v71
    %v109 = vadd.f32 %v108, %v72
    %v110 = vadd.f32 %v109, %v73
    %v111 = vadd.f32 %v110, %v74
    %v112 = vadd.f32 %v111, %v75
    %v113 = vadd.f32 %v112, %v76
    %114 = vadd.xlane.f32.xlu0 %v113
    %v115 = vpop.xlane.xlu0 %114
    %v116 = vadd.f32 %v98, %v115
    %117 = vst.msk [vmem:[#allocation3] sm:$0xff] %vm96, %v116
    %v118 = vld [vmem:[#allocation4] sm:$0xff]
    %v119 = vmul.f32 %v45, %v61
    %v120 = vmul.f32 %v46, %v62
    %v121 = vmul.f32 %v47, %v63
    %v122 = vmul.f32 %v48, %v64
    %v123 = vmul.f32 %v49, %v65
    %v124 = vmul.f32 %v50, %v66
    %v125 = vmul.f32 %v51, %v67
    %v126 = vmul.f32 %v52, %v68
    %v127 = vmul.f32 %v53, %v69
    %v128 = vmul.f32 %v54, %v70
    %v129 = vmul.f32 %v55, %v71
    %v130 = vmul.f32 %v56, %v72
    %v131 = vmul.f32 %v57, %v73
    %v132 = vmul.f32 %v58, %v74
    %v133 = vmul.f32 %v59, %v75
    %v134 = vmul.f32 %v60, %v76
    %v135 = vadd.f32 %v119, %v120
    %v136 = vadd.f32 %v135, %v121
    %v137 = vadd.f32 %v136, %v122
    %v138 = vadd.f32 %v137, %v123
    %v139 = vadd.f32 %v138, %v124
    %v140 = vadd.f32 %v139, %v125
    %v141 = vadd.f32 %v140, %v126
    %v142 = vadd.f32 %v141, %v127
    %v143 = vadd.f32 %v142, %v128
    %v144 = vadd.f32 %v143, %v129
    %v145 = vadd.f32 %v144, %v130
    %v146 = vadd.f32 %v145, %v131
    %v147 = vadd.f32 %v146, %v132
    %v148 = vadd.f32 %v147, %v133
    %v149 = vadd.f32 %v148, %v134
    %150 = vadd.xlane.f32.xlu0 %v149
    %v151 = vpop.xlane.xlu0 %150
    %v152 = vadd.f32 %v118, %v151
    %153 = vst.msk [vmem:[#allocation4] sm:$0xff] %vm96, %v152
    %v154 = vld [vmem:[#allocation5] sm:$0xff]
    %v155 = vmul.f32 %v45, %v45
    %v156 = vmul.f32 %v46, %v46
    %v157 = vmul.f32 %v47, %v47
    %v158 = vmul.f32 %v48, %v48
    %v159 = vmul.f32 %v49, %v49
    %v160 = vmul.f32 %v50, %v50
    %v161 = vmul.f32 %v51, %v51
    %v162 = vmul.f32 %v52, %v52
    %v163 = vmul.f32 %v53, %v53
    %v164 = vmul.f32 %v54, %v54
    %v165 = vmul.f32 %v55, %v55
    %v166 = vmul.f32 %v56, %v56
    %v167 = vmul.f32 %v57, %v57
    %v168 = vmul.f32 %v58, %v58
    %v169 = vmul.f32 %v59, %v59
    %v170 = vmul.f32 %v60, %v60
    %v171 = vadd.f32 %v155, %v156
    %v172 = vadd.f32 %v171, %v157
    %v173 = vadd.f32 %v172, %v158
    %v174 = vadd.f32 %v173, %v159
    %v175 = vadd.f32 %v174, %v160
    %v176 = vadd.f32 %v175, %v161
    %v177 = vadd.f32 %v176, %v162
    %v178 = vadd.f32 %v177, %v163
    %v179 = vadd.f32 %v178, %v164
    %v180 = vadd.f32 %v179, %v165
    %v181 = vadd.f32 %v180, %v166
    %v182 = vadd.f32 %v181, %v167
    %v183 = vadd.f32 %v182, %v168
    %v184 = vadd.f32 %v183, %v169
    %v185 = vadd.f32 %v184, %v170
    %186 = vadd.xlane.f32.xlu0 %v185
    %v187 = vpop.xlane.xlu0 %186
    %v188 = vadd.f32 %v154, %v187
    %189 = vst.msk [vmem:[#allocation5] sm:$0xff] %vm96, %v188
    %v190 = vld [vmem:[#allocation6] sm:$0xff]
    %v191 = vmul.f32 %v61, %v61
    %v192 = vmul.f32 %v62, %v62
    %v193 = vmul.f32 %v63, %v63
    %v194 = vmul.f32 %v64, %v64
    %v195 = vmul.f32 %v65, %v65
    %v196 = vmul.f32 %v66, %v66
    %v197 = vmul.f32 %v67, %v67
    %v198 = vmul.f32 %v68, %v68
    %v199 = vmul.f32 %v69, %v69
    %v200 = vmul.f32 %v70, %v70
    %v201 = vmul.f32 %v71, %v71
    %v202 = vmul.f32 %v72, %v72
    %v203 = vmul.f32 %v73, %v73
    %v204 = vmul.f32 %v74, %v74
    %v205 = vmul.f32 %v75, %v75
    %v206 = vmul.f32 %v76, %v76
    %v207 = vadd.f32 %v191, %v192
    %v208 = vadd.f32 %v207, %v193
    %v209 = vadd.f32 %v208, %v194
    %v210 = vadd.f32 %v209, %v195
    %v211 = vadd.f32 %v210, %v196
    %v212 = vadd.f32 %v211, %v197
    %v213 = vadd.f32 %v212, %v198
    %v214 = vadd.f32 %v213, %v199
    %v215 = vadd.f32 %v214, %v200
    %v216 = vadd.f32 %v215, %v201
    %v217 = vadd.f32 %v216, %v202
    %v218 = vadd.f32 %v217, %v203
    %v219 = vadd.f32 %v218, %v204
    %v220 = vadd.f32 %v219, %v205
    %v221 = vadd.f32 %v220, %v206
    %222 = vadd.xlane.f32.xlu0 %v221
    %v223 = vpop.xlane.xlu0 %222
    %v224 = vadd.f32 %v190, %v223
    %225 = vst.msk [vmem:[#allocation6] sm:$0xff] %vm96, %v224
    // Predicated region
    $region22: #{tpu_custom_call.1} parent=1 // pred_check
      %p226 = pneg %p35
    $region23: #{tpu_custom_call.1} parent=1 // pred_check_branch
      %228 = sbr.rel (%p226) target = $region25
    $region24: #{tpu_custom_call.1} parent=1 // pred_region
      %v229 = vld [vmem:[#allocation2] sm:$0xff]
      %v230 = vld [vmem:[#allocation3] sm:$0xff]
      %v231 = vld [vmem:[#allocation4] sm:$0xff]
      %v232 = vmul.f32 %v229, %v230
      %v233 = vmul.f32 %v232, 0.00048828125
      %v234 = vsub.f32 %v231, %v233
      %v235 = vld [vmem:[#allocation6] sm:$0xff]
      %v236 = vmul.f32 %v230, %v230
      %v237 = vmul.f32 %v236, 0.00048828125
      %v238 = vsub.f32 %v235, %v237
      %v239 = vld [vmem:[#allocation5] sm:$0xff]
      %v240 = vmul.f32 %v229, %v229
      %v241 = vmul.f32 %v240, 0.00048828125
      %v242 = vsub.f32 %v239, %v241
      %v243 = vadd.f32 %v234, 1.1920929e-07
      %v244 = vadd.f32 %v238, 1.1920929e-07
      %v245 = vrcp.pop %v244
      %v246 = vmul.f32 %v243, %v245
      %v247 = vmul.f32 %v246, %v246
      %v248 = vmul.f32 %v247, %v238
      %v249 = vmul.f32 %v246, 2.0
      %v250 = vmul.f32 %v249, %v234
      %v251 = vsub.f32 %v242, %v250
      %v252 = vadd.f32 %v251, %v248
      %v253 = vmax.f32 %v252, 0.0
      %v254 = vadd.f32 %v248, 1.1920929e-07
      %v255 = vadd.f32 %v253, 1.1920929e-07
      %v256 = vrcp.pop %v255
      %v257 = vmul.f32 %v254, %v256
      %v258 = vlog2.pop %v257
      %v259 = vmul.f32 %v258, 0.6931472
      %v260 = vmul.f32 %v259, 4.3429446
      %261 = vst.msk [vmem:[%s2] sm:$0xff] %vm96, %v260
    $region25: #{tpu_custom_call.1} parent=1 // pred_fallthru
      _
    // Predicated region
    $region26: #{tpu_custom_call.1} parent=1 // pred_check
      _
    $region27: #{tpu_custom_call.1} parent=1 // pred_check_branch
      %263 = sbr.rel (0) target = $region29
    $region28: #{tpu_custom_call.1} parent=1 // pred_region
      _
    $region29: #{tpu_custom_call.1} parent=1 // pred_fallthru
      _
    // Predicated region
    $region30: #{tpu_custom_call.1} parent=1 // pred_check
      _
    $region31: #{tpu_custom_call.1} parent=1 // pred_check_branch
      %265 = sbr.rel (0) target = $region33
    $region32: #{tpu_custom_call.1} parent=1 // pred_region
      _
    $region33: #{tpu_custom_call.1} parent=1 // pred_fallthru
      _
    %266 = vsyncpa [#allocation8], 1
    %267 = vsyncpa [#allocation10], 1

</llo_original>
